<compile_context>
chip_gen: v5e
topology: v5e:2x2
jax: 0.10.0
libtpu: 0.0.40
codegen_flags: <defaults>
</compile_context>

<pallas_src>
import functools

import jax
import jax.numpy as jnp
import numpy as np
from jax.experimental import pallas as pl
from jax.experimental.pallas import tpu as pltpu


def _round_up(n, m):
    return ((n + m - 1) // m) * m


def _fdiff2_kernel(xt_ref, zc_ref, cs_ref, ct_ref, out_ref):
    """xt_ref : (2, TB)  row 0 = x, row 1 = y (batch on lanes).
       zc_ref : (H, 8)   columns 0..2 = [wx, wy, b1] (rest zero-pad).
       cs_ref : (8, H)   rows 0..1 = [w2*wx, w2*wy], rest zero.
       ct_ref : (8, H)   rows 2..4 = [w2*wx*wx, w2*wx*wy, w2*wy*wy], rest zero.
       out_ref: (8, TB)  rows 0..4 = u_x, u_y, u_xx, u_xy, u_yy; rows 5..7 = 0.
    """
    xr = xt_ref[0:1, :]          # (1, TB)
    yr = xt_ref[1:2, :]          # (1, TB)

    wx = zc_ref[:, 0:1]          # (H, 1)
    wy = zc_ref[:, 1:2]
    b1 = zc_ref[:, 2:3]

    # Hidden pre-activation via two VPU broadcast FMAs (no K=2 MXU matmul).
    z = wx * xr + wy * yr + b1                       # (H, TB)
    a = jnp.tanh(z)                                  # EUP
    s = 1.0 - a * a                                  # tanh'(z)
    t = -2.0 * a * s                                 # tanh''(z)

    # Five weighted H-reductions as two small f32 MXU matmuls; the summed
    # (8, TB) result is the packed output block -> single unmasked store.
    out_ref[...] = (
        jnp.dot(cs_ref[...], s, preferred_element_type=jnp.float32,
                precision=jax.lax.Precision.HIGHEST)
        + jnp.dot(ct_ref[...], t, preferred_element_type=jnp.float32,
                  precision=jax.lax.Precision.HIGHEST))


@functools.partial(jax.jit, static_argnames=("block_b",))
def fdiff2_pallas(x, w1, b1, w2, *, block_b=8192):
    """Returns dict of u_x, u_y, u_xx, u_xy, u_yy; each shape (B,)."""
    B = x.shape[0]
    H = w1.shape[0]

    # Batch tile: 128-aligned (lane-dense), large enough to amortize per-step
    # overhead, small enough to sit comfortably in scoped VMEM everywhere.
    tb = min(block_b, _round_up(B, 128))
    tb = _round_up(tb, 128)
    b_pad = _round_up(B, tb)
    # v7x has 2 TensorCores sharing the "parallel" grid axis: for moderate or
    # large batches make sure there are at least 2 grid tiles.
    if b_pad // tb < 2 and b_pad >= 256:
        tb = _round_up(b_pad // 2, 128)
        b_pad = _round_up(B, tb)

    # Transposed, zero-padded input: (2, B_pad), batch on the lane axis.
    # Padded columns (x = y = 0) give finite values and are sliced off below.
    xt = jnp.pad(x.astype(jnp.float32).T, ((0, 0), (0, b_pad - B)))

    # Fold per-hidden-unit constants once, outside the kernel.
    wx = w1[:, 0].astype(jnp.float32)
    wy = w1[:, 1].astype(jnp.float32)
    b1f = b1.astype(jnp.float32)
    w2f = w2.astype(jnp.float32)

    zc = jnp.zeros((H, 8), jnp.float32)
    zc = zc.at[:, 0].set(wx).at[:, 1].set(wy).at[:, 2].set(b1f)

    cs = jnp.zeros((8, H), jnp.float32)          # contracts with s = tanh'
    cs = cs.at[0].set(w2f * wx).at[1].set(w2f * wy)
    ct = jnp.zeros((8, H), jnp.float32)          # contracts with t = tanh''
    ct = (ct.at[2].set(w2f * wx * wx)
            .at[3].set(w2f * wx * wy)
            .at[4].set(w2f * wy * wy))

    grid = (b_pad // tb,)
    out = pl.pallas_call(
        _fdiff2_kernel,
        out_shape=jax.ShapeDtypeStruct((8, b_pad), jnp.float32),
        grid=grid,
        in_specs=[
            pl.BlockSpec((2, tb), lambda i: (0, i)),   # transposed inputs
            pl.BlockSpec((H, 8), lambda i: (0, 0)),    # z constants
            pl.BlockSpec((8, H), lambda i: (0, 0)),    # s-contraction matrix
            pl.BlockSpec((8, H), lambda i: (0, 0)),    # t-contraction matrix
        ],
        out_specs=pl.BlockSpec((8, tb), lambda i: (0, i)),
        compiler_params=pltpu.CompilerParams(
            dimension_semantics=("parallel",)),
    )(xt, zc, cs, ct)

    out = out[:, :B]
    return {'u_x': out[0], 'u_y': out[1],
            'u_xx': out[2], 'u_xy': out[3], 'u_yy': out[4]}


def _f_ref(X, w1, b1, w2, b2):
    """Plain-JAX reference of f (the wrapped network)."""
    return jnp.tanh(X @ w1.T + b1) @ w2 + b2


def _reference_fdiff2(X, w1, b1, w2, b2):
    """Autodiff reference matching the PyTorch fdiff2 semantics."""
    u_scalar = lambda xi: _f_ref(xi[None, :], w1, b1, w2, b2)[0]
    g = jax.vmap(jax.grad(u_scalar))(X)          # (B, 2)
    Hm = jax.vmap(jax.hessian(u_scalar))(X)      # (B, 2, 2)
    return {'u_x': g[:, 0], 'u_y': g[:, 1],
            'u_xx': Hm[:, 0, 0], 'u_xy': Hm[:, 0, 1], 'u_yy': Hm[:, 1, 1]}


if __name__ == "__main__":
    B = 8      # batch_size (matches grad_ones = torch.ones(batch_size))
    H = 32     # hidden width of the synthetic f

    key = jax.random.PRNGKey(0)
    kx, kw1, kb1, kw2, kb2 = jax.random.split(key, 5)

    X = jax.random.normal(kx, (B, 2), dtype=jnp.float32)
    W1 = jax.random.normal(kw1, (H, 2), dtype=jnp.float32) * 0.5
    b1v = jax.random.normal(kb1, (H,), dtype=jnp.float32) * 0.1
    w2v = jax.random.normal(kw2, (H,), dtype=jnp.float32) * 0.5
    b2v = jax.random.normal(kb2, (), dtype=jnp.float32)   # no effect on derivs

    res = fdiff2_pallas(X, W1, b1v, w2v)
    jax.block_until_ready(res)

    ref = _reference_fdiff2(X, W1, b1v, w2v, b2v)
    for k in ('u_x', 'u_y', 'u_xx', 'u_xy', 'u_yy'):
        np.testing.assert_allclose(np.asarray(res[k]), np.asarray(ref[k]),
                                   rtol=1e-4, atol=1e-5)

    print("KERNEL_OK")
</pallas_src>

<mosaic_0001>
module attributes {stable_mosaic.version = 11 : i64} {
  func.func @_fdiff2_kernel(%arg0: i32, %arg1: memref<2x128xf32, #tpu.memory_space<vmem>>, %arg2: memref<32x8xf32, #tpu.memory_space<vmem>>, %arg3: memref<8x32xf32, #tpu.memory_space<vmem>>, %arg4: memref<8x32xf32, #tpu.memory_space<vmem>>, %arg5: memref<8x128xf32, #tpu.memory_space<vmem>>) attributes {dimension_semantics = [#tpu.dimension_semantics<parallel>], iteration_bounds = array<i64: 1>, scalar_prefetch = 0 : i64, scratch_operands = 0 : i64, tpu.core_type = #tpu.core_type<tc>, window_params = [{transform_indices = @transform_0, window_bounds = array<i64: 2, 128>}, {pipeline_mode = #tpu.pipeline_mode<synchronous>, transform_indices = @transform_1, window_bounds = array<i64: 32, 8>}, {pipeline_mode = #tpu.pipeline_mode<synchronous>, transform_indices = @transform_2, window_bounds = array<i64: 8, 32>}, {pipeline_mode = #tpu.pipeline_mode<synchronous>, transform_indices = @transform_3, window_bounds = array<i64: 8, 32>}, {transform_indices = @transform_4, window_bounds = array<i64: 8, 128>}]} {
    %c0 = arith.constant 0 : index
    %c0_0 = arith.constant 0 : index
    %0 = vector.load %arg1[%c0, %c0_0] : memref<2x128xf32, #tpu.memory_space<vmem>>, vector<1x128xf32>
    %c1 = arith.constant 1 : index
    %c0_1 = arith.constant 0 : index
    %1 = vector.load %arg1[%c1, %c0_1] : memref<2x128xf32, #tpu.memory_space<vmem>>, vector<1x128xf32>
    %c0_2 = arith.constant 0 : index
    %c0_3 = arith.constant 0 : index
    %2 = vector.load %arg2[%c0_2, %c0_3] : memref<32x8xf32, #tpu.memory_space<vmem>>, vector<32x1xf32>
    %c0_4 = arith.constant 0 : index
    %c1_5 = arith.constant 1 : index
    %3 = vector.load %arg2[%c0_4, %c1_5] : memref<32x8xf32, #tpu.memory_space<vmem>>, vector<32x1xf32>
    %c0_6 = arith.constant 0 : index
    %c2 = arith.constant 2 : index
    %4 = vector.load %arg2[%c0_6, %c2] : memref<32x8xf32, #tpu.memory_space<vmem>>, vector<32x1xf32>
    %5 = vector.broadcast %2 : vector<32x1xf32> to vector<32x128xf32>
    %6 = vector.broadcast %0 : vector<1x128xf32> to vector<32x128xf32>
    %7 = arith.mulf %5, %6 : vector<32x128xf32>
    %8 = vector.broadcast %3 : vector<32x1xf32> to vector<32x128xf32>
    %9 = vector.broadcast %1 : vector<1x128xf32> to vector<32x128xf32>
    %10 = arith.mulf %8, %9 : vector<32x128xf32>
    %11 = arith.addf %7, %10 : vector<32x128xf32>
    %12 = vector.broadcast %4 : vector<32x1xf32> to vector<32x128xf32>
    %13 = arith.addf %11, %12 : vector<32x128xf32>
    %14 = math.tanh %13 : vector<32x128xf32>
    %15 = arith.mulf %14, %14 : vector<32x128xf32>
    %cst = arith.constant 1.000000e+00 : f32
    %16 = vector.broadcast %cst : f32 to vector<32x128xf32>
    %17 = arith.subf %16, %15 : vector<32x128xf32>
    %cst_7 = arith.constant -2.000000e+00 : f32
    %18 = vector.broadcast %cst_7 : f32 to vector<32x128xf32>
    %19 = arith.mulf %18, %14 : vector<32x128xf32>
    %20 = arith.mulf %19, %17 : vector<32x128xf32>
    %c0_8 = arith.constant 0 : index
    %c0_9 = arith.constant 0 : index
    %21 = vector.load %arg3[%c0_8, %c0_9] : memref<8x32xf32, #tpu.memory_space<vmem>>, vector<8x32xf32>
    %cst_10 = arith.constant dense<0.000000e+00> : vector<8x128xf32>
    %22 = tpu.matmul %21, %17, %cst_10 {dimension_numbers = #tpu.dot_dimension_numbers<[1], [0], [0], [1], [0, 0, 1, 1], [], []>, precision = #tpu.contract_precision<fp32>} : vector<8x32xf32>, vector<32x128xf32>, vector<8x128xf32> -> vector<8x128xf32>
    %c0_11 = arith.constant 0 : index
    %c0_12 = arith.constant 0 : index
    %23 = vector.load %arg4[%c0_11, %c0_12] : memref<8x32xf32, #tpu.memory_space<vmem>>, vector<8x32xf32>
    %cst_13 = arith.constant dense<0.000000e+00> : vector<8x128xf32>
    %24 = tpu.matmul %23, %20, %cst_13 {dimension_numbers = #tpu.dot_dimension_numbers<[1], [0], [0], [1], [0, 0, 1, 1], [], []>, precision = #tpu.contract_precision<fp32>} : vector<8x32xf32>, vector<32x128xf32>, vector<8x128xf32> -> vector<8x128xf32>
    %25 = arith.addf %22, %24 : vector<8x128xf32>
    %c0_14 = arith.constant 0 : index
    %c0_15 = arith.constant 0 : index
    %26 = vector.load %arg5[%c0_14, %c0_15] : memref<8x128xf32, #tpu.memory_space<vmem>>, vector<8x128xf32>
    tpu.vector_store %arg5[%c0_14, %c0_15], %25 {strides = array<i32>} : memref<8x128xf32, #tpu.memory_space<vmem>>, vector<8x128xf32>,
    return
  }
  func.func @transform_0(%arg0: i32) -> (i32, i32) {
    %c0_i32 = arith.constant 0 : i32
    %c0_i32_0 = arith.constant 0 : i32
    return %c0_i32, %arg0 : i32, i32
  }
  func.func @transform_1(%arg0: i32) -> (i32, i32) {
    %c0_i32 = arith.constant 0 : i32
    %c0_i32_0 = arith.constant 0 : i32
    %c0_i32_1 = arith.constant 0 : i32
    return %c0_i32, %c0_i32_0 : i32, i32
  }
  func.func @transform_2(%arg0: i32) -> (i32, i32) {
    %c0_i32 = arith.constant 0 : i32
    %c0_i32_0 = arith.constant 0 : i32
    %c0_i32_1 = arith.constant 0 : i32
    return %c0_i32, %c0_i32_0 : i32, i32
  }
  func.func @transform_3(%arg0: i32) -> (i32, i32) {
    %c0_i32 = arith.constant 0 : i32
    %c0_i32_0 = arith.constant 0 : i32
    %c0_i32_1 = arith.constant 0 : i32
    return %c0_i32, %c0_i32_0 : i32, i32
  }
  func.func @transform_4(%arg0: i32) -> (i32, i32) {
    %c0_i32 = arith.constant 0 : i32
    %c0_i32_0 = arith.constant 0 : i32
    return %c0_i32, %arg0 : i32, i32
  }
}

</mosaic_0001>

<llo_original>
// kernel: fdiff2_pallas.1
$region0: #{fdiff2_pallas.1}
  #allocation0 [shape = 'u32[]', space=smem, size = 0x4, offset = 0x4, fixed_abs, tag = 'smem constant byte address 0x4 - core index']
  #allocation1 [shape = 'u32[72,128]{1,0:T(1,128)}', space=vmem, size = 0x9000, scoped, tag = 'internal scratch']
  %s0 = inlined_call_operand.vmem [shape: f32[2,128], index: 0, kind: input, shape index: {}]
  %s1 = inlined_call_operand.vmem [shape: f32[32,8], index: 1, kind: input, shape index: {}]
  %s2 = inlined_call_operand.vmem [shape: f32[8,32], index: 2, kind: input, shape index: {}]
  %s3 = inlined_call_operand.vmem [shape: f32[8,32], index: 3, kind: input, shape index: {}]
  %s4 = inlined_call_operand.vmem [shape: f32[8,128], index: 4, kind: output, shape index: {}]
  %s5 = sld [smem:[#allocation0]]
  $region26: #{fdiff2_pallas.1} parent=0
    _
  %s7 = ssub.s32 1, %s5
  %s8 = scalar_select 0, %s7, %s5
  // Predicated region
  $region2: #{fdiff2_pallas.1} parent=0 // pred_check
    _
  $region3: #{fdiff2_pallas.1} parent=0 // pred_check_branch
    %10 = sbr.rel (0) target = $region5
  $region4: #{fdiff2_pallas.1} parent=0 // pred_region
    _
  $region5: #{fdiff2_pallas.1} parent=0 // pred_fallthru
    _
  // Predicated region
  $region6: #{fdiff2_pallas.1} parent=0 // pred_check
    _
  $region7: #{fdiff2_pallas.1} parent=0 // pred_check_branch
    %12 = sbr.rel (0) target = $region9
  $region8: #{fdiff2_pallas.1} parent=0 // pred_region
    _
  $region9: #{fdiff2_pallas.1} parent=0 // pred_fallthru
    _
  // Predicated region
  $region10: #{fdiff2_pallas.1} parent=0 // pred_check
    _
  $region11: #{fdiff2_pallas.1} parent=0 // pred_check_branch
    %14 = sbr.rel (0) target = $region13
  $region12: #{fdiff2_pallas.1} parent=0 // pred_region
    _
  $region13: #{fdiff2_pallas.1} parent=0 // pred_fallthru
    _
  // Predicated region
  $region14: #{fdiff2_pallas.1} parent=0 // pred_check
    _
  $region15: #{fdiff2_pallas.1} parent=0 // pred_check_branch
    %16 = sbr.rel (0) target = $region17
  $region16: #{fdiff2_pallas.1} parent=0 // pred_region
    _
  $region17: #{fdiff2_pallas.1} parent=0 // pred_fallthru
    _
  %v17 = vld [vmem:[%s0] sm:$0x1]
  %v18 = vld [vmem:[%s0 + $0x1] sm:$0x1]
  %v19 = vld [vmem:[%s1] sm:$0xff]
  %v20 = vld [vmem:[%s1 + $0x8] sm:$0xff]
  %v21 = vld [vmem:[%s1 + $0x10] sm:$0xff]
  %v22 = vld [vmem:[%s1 + $0x18] sm:$0xff]
  %24 = vset.pattern.permute.xlu0 0
  %25 = vperm.xlu0 %24, %v19
  %v26 = vpop.permute.xlu0 %25
  %29 = vset.pattern.permute.xlu0 0
  %30 = vperm.xlu0 %29, %v20
  %v31 = vpop.permute.xlu0 %30
  %34 = vset.pattern.permute.xlu0 0
  %35 = vperm.xlu0 %34, %v21
  %v36 = vpop.permute.xlu0 %35
  %39 = vset.pattern.permute.xlu0 0
  %40 = vperm.xlu0 %39, %v22
  %v41 = vpop.permute.xlu0 %40
  %v43 = vperm.slane %v17, 0
  %v44 = vmul.f32 %v26, %v43
  %v45 = vmul.f32 %v31, %v43
  %v46 = vmul.f32 %v36, %v43
  %v47 = vmul.f32 %v41, %v43
  %48 = vset.pattern.permute.xlu0 1
  %49 = vperm.xlu0 %48, %v19
  %v50 = vpop.permute.xlu0 %49
  %52 = vset.pattern.permute.xlu0 1
  %53 = vperm.xlu0 %52, %v20
  %v54 = vpop.permute.xlu0 %53
  %56 = vset.pattern.permute.xlu0 1
  %57 = vperm.xlu0 %56, %v21
  %v58 = vpop.permute.xlu0 %57
  %60 = vset.pattern.permute.xlu0 1
  %61 = vperm.xlu0 %60, %v22
  %v62 = vpop.permute.xlu0 %61
  %v64 = vperm.slane %v18, 0
  %v65 = vmul.f32 %v50, %v64
  %v66 = vmul.f32 %v54, %v64
  %v67 = vmul.f32 %v58, %v64
  %v68 = vmul.f32 %v62, %v64
  %v69 = vadd.f32 %v44, %v65
  %v70 = vadd.f32 %v45, %v66
  %v71 = vadd.f32 %v46, %v67
  %v72 = vadd.f32 %v47, %v68
  %73 = vset.pattern.permute.xlu0 2
  %74 = vperm.xlu0 %73, %v19
  %v75 = vpop.permute.xlu0 %74
  %77 = vset.pattern.permute.xlu0 2
  %78 = vperm.xlu0 %77, %v20
  %v79 = vpop.permute.xlu0 %78
  %81 = vset.pattern.permute.xlu0 2
  %82 = vperm.xlu0 %81, %v21
  %v83 = vpop.permute.xlu0 %82
  %85 = vset.pattern.permute.xlu0 2
  %86 = vperm.xlu0 %85, %v22
  %v87 = vpop.permute.xlu0 %86
  %v89 = vadd.f32 %v69, %v75
  %v90 = vadd.f32 %v70, %v79
  %v91 = vadd.f32 %v71, %v83
  %v92 = vadd.f32 %v72, %v87
  %v93 = vtanh.pop %v89
  %v94 = vtanh.pop %v90
  %v95 = vtanh.pop %v91
  %v96 = vtanh.pop %v92
  %v97 = vmul.f32 %v93, %v93
  %v98 = vmul.f32 %v94, %v94
  %v99 = vmul.f32 %v95, %v95
  %v100 = vmul.f32 %v96, %v96
  %v101 = vsub.f32 1.0, %v97
  %v102 = vsub.f32 1.0, %v98
  %v103 = vsub.f32 1.0, %v99
  %v104 = vsub.f32 1.0, %v100
  %v105 = vmul.f32 %v93, -2.0
  %v106 = vmul.f32 %v94, -2.0
  %v107 = vmul.f32 %v95, -2.0
  %v108 = vmul.f32 %v96, -2.0
  %v109 = vmul.f32 %v105, %v101
  %v110 = vmul.f32 %v106, %v102
  %v111 = vmul.f32 %v107, %v103
  %v112 = vmul.f32 %v108, %v104
  %v113 = vld [vmem:[%s2] sm:$0xff]
  %v114 = vld [vmem:[%s3] sm:$0xff]
  %vm115 = vcmask 261120
  %v117 = vsel %vm115, %v114, 0
  %119 = vmatpush.msra.mxu0 0.0
  %120 = vmatpush.msra.mxu0 0.0
  %121 = vmatpush.msra.mxu0 0.0
  %122 = vmatpush.msra.mxu0 0.0
  %123 = vmatpush.msra.mxu0 0.0
  %124 = vmatpush.msra.mxu0 0.0
  %125 = vmatpush.msra.mxu0 0.0
  %126 = vmatpush.msra.mxu0 0.0
  %127 = vmatpush.msra.mxu0 0.0
  %128 = vmatpush.msra.mxu0 0.0
  %129 = vmatpush.msra.mxu0 0.0
  %130 = vmatpush.msra.mxu0 0.0
  %v131 = vand.u32 %v112, 4294901760
  %132 = vmatpush.msra.mxu0 %v131
  %v133 = vand.u32 %v111, 4294901760
  %134 = vmatpush.msra.mxu0 %v133
  %v135 = vand.u32 %v110, 4294901760
  %136 = vmatpush.msra.mxu0 %v135
  %v137 = vand.u32 %v109, 4294901760
  %138 = vmatpush.msra.mxu0 %v137
  %v139 = vand.u32 %v117, 4294901760
  %v140 = vsub.f32 %v117, %v139
  %v141 = vand.u32 %v140, 4294901760
  %v142 = vsub.f32 %v140, %v141
  %v143 = vand.u32 %v142, 4294901760
  %144 = vmatmul.f32.gmra.mxu0 %v143
  %v145 = vpop.f32.mrf.mxu0
  %v146 = vadd.f32 0.0, %v145
  %147 = vdwg.mxu0
  %148 = vmatpush.msra.mxu0 0.0
  %149 = vmatpush.msra.mxu0 0.0
  %150 = vmatpush.msra.mxu0 0.0
  %151 = vmatpush.msra.mxu0 0.0
  %152 = vmatpush.msra.mxu0 0.0
  %153 = vmatpush.msra.mxu0 0.0
  %154 = vmatpush.msra.mxu0 0.0
  %155 = vmatpush.msra.mxu0 0.0
  %156 = vmatpush.msra.mxu0 0.0
  %157 = vmatpush.msra.mxu0 0.0
  %158 = vmatpush.msra.mxu0 0.0
  %159 = vmatpush.msra.mxu0 0.0
  %v160 = vand.u32 %v112, 4294901760
  %v161 = vsub.f32 %v112, %v160
  %v162 = vand.u32 %v161, 4294901760
  %v163 = vsub.f32 %v161, %v162
  %v164 = vand.u32 %v163, 4294901760
  %165 = vmatpush.msra.mxu0 %v164
  %v166 = vand.u32 %v111, 4294901760
  %v167 = vsub.f32 %v111, %v166
  %v168 = vand.u32 %v167, 4294901760
  %v169 = vsub.f32 %v167, %v168
  %v170 = vand.u32 %v169, 4294901760
  %171 = vmatpush.msra.mxu0 %v170
  %v172 = vand.u32 %v110, 4294901760
  %v173 = vsub.f32 %v110, %v172
  %v174 = vand.u32 %v173, 4294901760
  %v175 = vsub.f32 %v173, %v174
  %v176 = vand.u32 %v175, 4294901760
  %177 = vmatpush.msra.mxu0 %v176
  %v178 = vand.u32 %v109, 4294901760
  %v179 = vsub.f32 %v109, %v178
  %v180 = vand.u32 %v179, 4294901760
  %v181 = vsub.f32 %v179, %v180
  %v182 = vand.u32 %v181, 4294901760
  %183 = vmatpush.msra.mxu0 %v182
  %v184 = vand.u32 %v117, 4294901760
  %185 = vmatmul.f32.gmra.mxu0 %v184
  %v186 = vpop.f32.mrf.mxu0
  %v187 = vadd.f32 %v146, %v186
  %188 = vdwg.mxu0
  %189 = vmatpush.msra.mxu0 0.0
  %190 = vmatpush.msra.mxu0 0.0
  %191 = vmatpush.msra.mxu0 0.0
  %192 = vmatpush.msra.mxu0 0.0
  %193 = vmatpush.msra.mxu0 0.0
  %194 = vmatpush.msra.mxu0 0.0
  %195 = vmatpush.msra.mxu0 0.0
  %196 = vmatpush.msra.mxu0 0.0
  %197 = vmatpush.msra.mxu0 0.0
  %198 = vmatpush.msra.mxu0 0.0
  %199 = vmatpush.msra.mxu0 0.0
  %200 = vmatpush.msra.mxu0 0.0
  %v201 = vand.u32 %v112, 4294901760
  %v202 = vsub.f32 %v112, %v201
  %203 = vmatpush.msra.mxu0 %v202
  %v204 = vand.u32 %v111, 4294901760
  %v205 = vsub.f32 %v111, %v204
  %206 = vmatpush.msra.mxu0 %v205
  %v207 = vand.u32 %v110, 4294901760
  %v208 = vsub.f32 %v110, %v207
  %209 = vmatpush.msra.mxu0 %v208
  %v210 = vand.u32 %v109, 4294901760
  %v211 = vsub.f32 %v109, %v210
  %212 = vmatpush.msra.mxu0 %v211
  %v213 = vand.u32 %v117, 4294901760
  %v214 = vsub.f32 %v117, %v213
  %215 = vmatmul.f32.gmra.mxu0 %v214
  %v216 = vpop.f32.mrf.mxu0
  %v217 = vadd.f32 %v187, %v216
  %218 = vdwg.mxu0
  %219 = vmatpush.msra.mxu0 0.0
  %220 = vmatpush.msra.mxu0 0.0
  %221 = vmatpush.msra.mxu0 0.0
  %222 = vmatpush.msra.mxu0 0.0
  %223 = vmatpush.msra.mxu0 0.0
  %224 = vmatpush.msra.mxu0 0.0
  %225 = vmatpush.msra.mxu0 0.0
  %226 = vmatpush.msra.mxu0 0.0
  %227 = vmatpush.msra.mxu0 0.0
  %228 = vmatpush.msra.mxu0 0.0
  %229 = vmatpush.msra.mxu0 0.0
  %230 = vmatpush.msra.mxu0 0.0
  %v231 = vand.u32 %v112, 4294901760
  %232 = vmatpush.msra.mxu0 %v231
  %v233 = vand.u32 %v111, 4294901760
  %234 = vmatpush.msra.mxu0 %v233
  %v235 = vand.u32 %v110, 4294901760
  %236 = vmatpush.msra.mxu0 %v235
  %v237 = vand.u32 %v109, 4294901760
  %238 = vmatpush.msra.mxu0 %v237
  %v239 = vand.u32 %v117, 4294901760
  %v240 = vsub.f32 %v117, %v239
  %v241 = vand.u32 %v240, 4294901760
  %242 = vmatmul.f32.gmra.mxu0 %v241
  %v243 = vpop.f32.mrf.mxu0
  %v244 = vadd.f32 %v217, %v243
  %245 = vdwg.mxu0
  %246 = vmatpush.msra.mxu0 0.0
  %247 = vmatpush.msra.mxu0 0.0
  %248 = vmatpush.msra.mxu0 0.0
  %249 = vmatpush.msra.mxu0 0.0
  %250 = vmatpush.msra.mxu0 0.0
  %251 = vmatpush.msra.mxu0 0.0
  %252 = vmatpush.msra.mxu0 0.0
  %253 = vmatpush.msra.mxu0 0.0
  %254 = vmatpush.msra.mxu0 0.0
  %255 = vmatpush.msra.mxu0 0.0
  %256 = vmatpush.msra.mxu0 0.0
  %257 = vmatpush.msra.mxu0 0.0
  %v258 = vand.u32 %v112, 4294901760
  %v259 = vsub.f32 %v112, %v258
  %v260 = vand.u32 %v259, 4294901760
  %261 = vmatpush.msra.mxu0 %v260
  %v262 = vand.u32 %v111, 4294901760
  %v263 = vsub.f32 %v111, %v262
  %v264 = vand.u32 %v263, 4294901760
  %265 = vmatpush.msra.mxu0 %v264
  %v266 = vand.u32 %v110, 4294901760
  %v267 = vsub.f32 %v110, %v266
  %v268 = vand.u32 %v267, 4294901760
  %269 = vmatpush.msra.mxu0 %v268
  %v270 = vand.u32 %v109, 4294901760
  %v271 = vsub.f32 %v109, %v270
  %v272 = vand.u32 %v271, 4294901760
  %273 = vmatpush.msra.mxu0 %v272
  %v274 = vand.u32 %v117, 4294901760
  %275 = vmatmul.f32.gmra.mxu0 %v274
  %v276 = vpop.f32.mrf.mxu0
  %v277 = vadd.f32 %v244, %v276
  %278 = vdwg.mxu0
  %279 = vmatpush.msra.mxu0 0.0
  %280 = vmatpush.msra.mxu0 0.0
  %281 = vmatpush.msra.mxu0 0.0
  %282 = vmatpush.msra.mxu0 0.0
  %283 = vmatpush.msra.mxu0 0.0
  %284 = vmatpush.msra.mxu0 0.0
  %285 = vmatpush.msra.mxu0 0.0
  %286 = vmatpush.msra.mxu0 0.0
  %287 = vmatpush.msra.mxu0 0.0
  %288 = vmatpush.msra.mxu0 0.0
  %289 = vmatpush.msra.mxu0 0.0
  %290 = vmatpush.msra.mxu0 0.0
  %v291 = vand.u32 %v112, 4294901760
  %292 = vmatpush.msra.mxu0 %v291
  %v293 = vand.u32 %v111, 4294901760
  %294 = vmatpush.msra.mxu0 %v293
  %v295 = vand.u32 %v110, 4294901760
  %296 = vmatpush.msra.mxu0 %v295
  %v297 = vand.u32 %v109, 4294901760
  %298 = vmatpush.msra.mxu0 %v297
  %v299 = vand.u32 %v117, 4294901760
  %300 = vmatmul.f32.gmra.mxu0 %v299
  %v301 = vpop.f32.mrf.mxu0
  %v302 = vadd.f32 %v277, %v301
  %303 = vdwg.mxu0
  %v305 = vsel %vm115, %v113, 0
  %307 = vmatpush.msra.mxu0 0.0
  %308 = vmatpush.msra.mxu0 0.0
  %309 = vmatpush.msra.mxu0 0.0
  %310 = vmatpush.msra.mxu0 0.0
  %311 = vmatpush.msra.mxu0 0.0
  %312 = vmatpush.msra.mxu0 0.0
  %313 = vmatpush.msra.mxu0 0.0
  %314 = vmatpush.msra.mxu0 0.0
  %315 = vmatpush.msra.mxu0 0.0
  %316 = vmatpush.msra.mxu0 0.0
  %317 = vmatpush.msra.mxu0 0.0
  %318 = vmatpush.msra.mxu0 0.0
  %v319 = vand.u32 %v104, 4294901760
  %320 = vmatpush.msra.mxu0 %v319
  %v321 = vand.u32 %v103, 4294901760
  %322 = vmatpush.msra.mxu0 %v321
  %v323 = vand.u32 %v102, 4294901760
  %324 = vmatpush.msra.mxu0 %v323
  %v325 = vand.u32 %v101, 4294901760
  %326 = vmatpush.msra.mxu0 %v325
  %v327 = vand.u32 %v305, 4294901760
  %v328 = vsub.f32 %v305, %v327
  %v329 = vand.u32 %v328, 4294901760
  %v330 = vsub.f32 %v328, %v329
  %v331 = vand.u32 %v330, 4294901760
  %332 = vmatmul.f32.gmra.mxu0 %v331
  %v333 = vpop.f32.mrf.mxu0
  %v334 = vadd.f32 %v302, %v333
  %335 = vdwg.mxu0
  %336 = vmatpush.msra.mxu0 0.0
  %337 = vmatpush.msra.mxu0 0.0
  %338 = vmatpush.msra.mxu0 0.0
  %339 = vmatpush.msra.mxu0 0.0
  %340 = vmatpush.msra.mxu0 0.0
  %341 = vmatpush.msra.mxu0 0.0
  %342 = vmatpush.msra.mxu0 0.0
  %343 = vmatpush.msra.mxu0 0.0
  %344 = vmatpush.msra.mxu0 0.0
  %345 = vmatpush.msra.mxu0 0.0
  %346 = vmatpush.msra.mxu0 0.0
  %347 = vmatpush.msra.mxu0 0.0
  %v348 = vand.u32 %v104, 4294901760
  %v349 = vsub.f32 %v104, %v348
  %v350 = vand.u32 %v349, 4294901760
  %v351 = vsub.f32 %v349, %v350
  %v352 = vand.u32 %v351, 4294901760
  %353 = vmatpush.msra.mxu0 %v352
  %v354 = vand.u32 %v103, 4294901760
  %v355 = vsub.f32 %v103, %v354
  %v356 = vand.u32 %v355, 4294901760
  %v357 = vsub.f32 %v355, %v356
  %v358 = vand.u32 %v357, 4294901760
  %359 = vmatpush.msra.mxu0 %v358
  %v360 = vand.u32 %v102, 4294901760
  %v361 = vsub.f32 %v102, %v360
  %v362 = vand.u32 %v361, 4294901760
  %v363 = vsub.f32 %v361, %v362
  %v364 = vand.u32 %v363, 4294901760
  %365 = vmatpush.msra.mxu0 %v364
  %v366 = vand.u32 %v101, 4294901760
  %v367 = vsub.f32 %v101, %v366
  %v368 = vand.u32 %v367, 4294901760
  %v369 = vsub.f32 %v367, %v368
  %v370 = vand.u32 %v369, 4294901760
  %371 = vmatpush.msra.mxu0 %v370
  %v372 = vand.u32 %v305, 4294901760
  %373 = vmatmul.f32.gmra.mxu0 %v372
  %v374 = vpop.f32.mrf.mxu0
  %v375 = vadd.f32 %v334, %v374
  %376 = vdwg.mxu0
  %377 = vmatpush.msra.mxu0 0.0
  %378 = vmatpush.msra.mxu0 0.0
  %379 = vmatpush.msra.mxu0 0.0
  %380 = vmatpush.msra.mxu0 0.0
  %381 = vmatpush.msra.mxu0 0.0
  %382 = vmatpush.msra.mxu0 0.0
  %383 = vmatpush.msra.mxu0 0.0
  %384 = vmatpush.msra.mxu0 0.0
  %385 = vmatpush.msra.mxu0 0.0
  %386 = vmatpush.msra.mxu0 0.0
  %387 = vmatpush.msra.mxu0 0.0
  %388 = vmatpush.msra.mxu0 0.0
  %v389 = vand.u32 %v104, 4294901760
  %v390 = vsub.f32 %v104, %v389
  %391 = vmatpush.msra.mxu0 %v390
  %v392 = vand.u32 %v103, 4294901760
  %v393 = vsub.f32 %v103, %v392
  %394 = vmatpush.msra.mxu0 %v393
  %v395 = vand.u32 %v102, 4294901760
  %v396 = vsub.f32 %v102, %v395
  %397 = vmatpush.msra.mxu0 %v396
  %v398 = vand.u32 %v101, 4294901760
  %v399 = vsub.f32 %v101, %v398
  %400 = vmatpush.msra.mxu0 %v399
  %v401 = vand.u32 %v305, 4294901760
  %v402 = vsub.f32 %v305, %v401
  %403 = vmatmul.f32.gmra.mxu0 %v402
  %v404 = vpop.f32.mrf.mxu0
  %v405 = vadd.f32 %v375, %v404
  %406 = vdwg.mxu0
  %407 = vmatpush.msra.mxu0 0.0
  %408 = vmatpush.msra.mxu0 0.0
  %409 = vmatpush.msra.mxu0 0.0
  %410 = vmatpush.msra.mxu0 0.0
  %411 = vmatpush.msra.mxu0 0.0
  %412 = vmatpush.msra.mxu0 0.0
  %413 = vmatpush.msra.mxu0 0.0
  %414 = vmatpush.msra.mxu0 0.0
  %415 = vmatpush.msra.mxu0 0.0
  %416 = vmatpush.msra.mxu0 0.0
  %417 = vmatpush.msra.mxu0 0.0
  %418 = vmatpush.msra.mxu0 0.0
  %v419 = vand.u32 %v104, 4294901760
  %420 = vmatpush.msra.mxu0 %v419
  %v421 = vand.u32 %v103, 4294901760
  %422 = vmatpush.msra.mxu0 %v421
  %v423 = vand.u32 %v102, 4294901760
  %424 = vmatpush.msra.mxu0 %v423
  %v425 = vand.u32 %v101, 4294901760
  %426 = vmatpush.msra.mxu0 %v425
  %v427 = vand.u32 %v305, 4294901760
  %v428 = vsub.f32 %v305, %v427
  %v429 = vand.u32 %v428, 4294901760
  %430 = vmatmul.f32.gmra.mxu0 %v429
  %v431 = vpop.f32.mrf.mxu0
  %v432 = vadd.f32 %v405, %v431
  %433 = vdwg.mxu0
  %434 = vmatpush.msra.mxu0 0.0
  %435 = vmatpush.msra.mxu0 0.0
  %436 = vmatpush.msra.mxu0 0.0
  %437 = vmatpush.msra.mxu0 0.0
  %438 = vmatpush.msra.mxu0 0.0
  %439 = vmatpush.msra.mxu0 0.0
  %440 = vmatpush.msra.mxu0 0.0
  %441 = vmatpush.msra.mxu0 0.0
  %442 = vmatpush.msra.mxu0 0.0
  %443 = vmatpush.msra.mxu0 0.0
  %444 = vmatpush.msra.mxu0 0.0
  %445 = vmatpush.msra.mxu0 0.0
  %v446 = vand.u32 %v104, 4294901760
  %v447 = vsub.f32 %v104, %v446
  %v448 = vand.u32 %v447, 4294901760
  %449 = vmatpush.msra.mxu0 %v448
  %v450 = vand.u32 %v103, 4294901760
  %v451 = vsub.f32 %v103, %v450
  %v452 = vand.u32 %v451, 4294901760
  %453 = vmatpush.msra.mxu0 %v452
  %v454 = vand.u32 %v102, 4294901760
  %v455 = vsub.f32 %v102, %v454
  %v456 = vand.u32 %v455, 4294901760
  %457 = vmatpush.msra.mxu0 %v456
  %v458 = vand.u32 %v101, 4294901760
  %v459 = vsub.f32 %v101, %v458
  %v460 = vand.u32 %v459, 4294901760
  %461 = vmatpush.msra.mxu0 %v460
  %v462 = vand.u32 %v305, 4294901760
  %463 = vmatmul.f32.gmra.mxu0 %v462
  %v464 = vpop.f32.mrf.mxu0
  %v465 = vadd.f32 %v432, %v464
  %466 = vdwg.mxu0
  %467 = vmatpush.msra.mxu0 0.0
  %468 = vmatpush.msra.mxu0 0.0
  %469 = vmatpush.msra.mxu0 0.0
  %470 = vmatpush.msra.mxu0 0.0
  %471 = vmatpush.msra.mxu0 0.0
  %472 = vmatpush.msra.mxu0 0.0
  %473 = vmatpush.msra.mxu0 0.0
  %474 = vmatpush.msra.mxu0 0.0
  %475 = vmatpush.msra.mxu0 0.0
  %476 = vmatpush.msra.mxu0 0.0
  %477 = vmatpush.msra.mxu0 0.0
  %478 = vmatpush.msra.mxu0 0.0
  %v479 = vand.u32 %v104, 4294901760
  %480 = vmatpush.msra.mxu0 %v479
  %v481 = vand.u32 %v103, 4294901760
  %482 = vmatpush.msra.mxu0 %v481
  %v483 = vand.u32 %v102, 4294901760
  %484 = vmatpush.msra.mxu0 %v483
  %v485 = vand.u32 %v101, 4294901760
  %486 = vmatpush.msra.mxu0 %v485
  %v487 = vand.u32 %v305, 4294901760
  %488 = vmatmul.f32.gmra.mxu0 %v487
  %v489 = vpop.f32.mrf.mxu0
  %v490 = vadd.f32 %v465, %v489
  %491 = vdwg.mxu0
  %492 = vst [vmem:[%s4] sm:$0xff] %v490
  // Predicated region
  $region18: #{fdiff2_pallas.1} parent=0 // pred_check
    _
  $region19: #{fdiff2_pallas.1} parent=0 // pred_check_branch
    %494 = sbr.rel (0) target = $region21
  $region20: #{fdiff2_pallas.1} parent=0 // pred_region
    _
  $region21: #{fdiff2_pallas.1} parent=0 // pred_fallthru
    _
  // Predicated region
  $region22: #{fdiff2_pallas.1} parent=0 // pred_check
    _
  $region23: #{fdiff2_pallas.1} parent=0 // pred_check_branch
    %496 = sbr.rel (0) target = $region25
  $region24: #{fdiff2_pallas.1} parent=0 // pred_region
    _
  $region25: #{fdiff2_pallas.1} parent=0 // pred_fallthru
    _

</llo_original>
